<compile_context>
chip_gen: v7x
topology: tpu7x:2x2x1
jax: 0.10.0
libtpu: 0.0.40
codegen_flags: <defaults>
</compile_context>

<pallas_src>
import functools

import jax
import jax.numpy as jnp
from jax.experimental import pallas as pl
from jax.experimental.pallas import tpu as pltpu

HIDDEN = 128


def value_net_kernel(x_ref, w1_ref, b1_ref, w2_ref, b2_ref, w3_ref, b3_ref,
                     out_ref, *, bf16_epilogue):
    # fc1: cast the f32 x tile to bf16 here (a few VPU ops hidden under the
    # pipeline) instead of a separate XLA cast kernel; MXU matmul, f32 acc.
    h1 = jnp.dot(x_ref[...].astype(jnp.bfloat16), w1_ref[...],
                 preferred_element_type=jnp.float32)

    if bf16_epilogue:
        # v6e / v7x: bf16 VALU -> bias + ReLU at 2x elements per vreg op, and
        # the separate pre-fc2 cast disappears.
        h1 = jnp.maximum(h1.astype(jnp.bfloat16)
                         + b1_ref[...].astype(jnp.bfloat16), 0.0)
    else:
        # v5e: no bf16 VPU -> keep elementwise math in f32, cast only for MXU.
        h1 = jnp.maximum(h1 + b1_ref[...], 0.0).astype(jnp.bfloat16)

    # fc2: dominant FLOPs -> bf16 operands for MXU throughput, f32 accumulate.
    h2 = jnp.dot(h1, w2_ref[...], preferred_element_type=jnp.float32)
    h2 = jnp.maximum(h2 + b2_ref[...], 0.0)

    # fc3 (128 -> 1): an N=1 matmul would waste the MXU, so do it as a VPU
    # multiply + cross-lane (XLU) reduction instead.
    v = jnp.sum(h2 * w3_ref[...], axis=-1, keepdims=True)          # (tb, 1)
    # NOTE: the (tb, 1) store is lane-sparse (masked vst); kept for lowering
    # robustness -- a lane-dense (1, tb) output would need an in-kernel
    # (tb,1)->(1,tb) transpose plus 128-aligned batch tiles.
    out_ref[...] = (v + b3_ref[...]).astype(out_ref.dtype)


def _round_up(a, m):
    return ((a + m - 1) // m) * m


def _default_bf16_epilogue():
    """bf16 VALU exists on v6e/v7x; v5e and older lack it (keep f32 there)."""
    try:
        kind = jax.devices()[0].device_kind.lower()
    except Exception:
        return False
    return ("v6" in kind) or ("v7" in kind)


def prepare_params(params):
    """One-time weight prep, hoisted out of the forward path:
    bf16 casts for the MXU operands + 2-D broadcastable bias shapes."""
    w1, b1, w2, b2, w3, b3 = params
    return (
        jnp.asarray(w1, jnp.bfloat16),                      # (S, 128)
        jnp.asarray(b1, jnp.float32).reshape(1, HIDDEN),    # (1, 128)
        jnp.asarray(w2, jnp.bfloat16),                      # (128, 128)
        jnp.asarray(b2, jnp.float32).reshape(1, HIDDEN),    # (1, 128)
        jnp.asarray(w3, jnp.float32).reshape(1, HIDDEN),    # (1, 128) VPU fc3
        jnp.asarray(b3, jnp.float32).reshape(1, 1),         # (1, 1)
    )


def value_network_forward(x, prepared_params, *, block_b=1024,
                          bf16_epilogue=None):
    """x: (B, state_size) f32.  prepared_params: output of prepare_params().
    Returns (B, 1) f32."""
    w1, b1, w2, b2, w3, b3 = prepared_params
    B, S = x.shape
    if bf16_epilogue is None:
        bf16_epilogue = _default_bf16_epilogue()

    # Batch tile: multiple of 16 (full bf16 sublane packing), clamped to B.
    tb = min(_round_up(block_b, 16), _round_up(B, 16))
    grid = (pl.cdiv(B, tb),)   # no padding: boundary block masked on store

    # Weights/biases: resident across grid iterations (constant index_map).
    def resident(a):
        return pl.BlockSpec(a.shape, lambda i: (0,) * a.ndim)

    weight_bytes = sum(int(a.size) * a.dtype.itemsize for a in prepared_params)
    cost = pl.CostEstimate(
        flops=2 * B * (S * HIDDEN + HIDDEN * HIDDEN + HIDDEN),
        transcendentals=0,
        bytes_accessed=B * (S * 4 + 4) + weight_bytes)

    kernel = functools.partial(value_net_kernel, bf16_epilogue=bf16_epilogue)

    return pl.pallas_call(
        kernel,
        out_shape=jax.ShapeDtypeStruct((B, 1), jnp.float32),
        grid=grid,
        in_specs=[
            pl.BlockSpec((tb, S), lambda i: (i, 0)),   # x: streamed f32 tiles
            resident(w1), resident(b1),
            resident(w2), resident(b2),
            resident(w3), resident(b3),
        ],
        out_specs=pl.BlockSpec((tb, 1), lambda i: (i, 0)),
        compiler_params=pltpu.CompilerParams(
            dimension_semantics=("parallel",)),
        cost_estimate=cost,
    )(x, w1, b1, w2, b2, w3, b3)


def init_params(key, state_size, hidden=HIDDEN):
    """Deterministic init mimicking PyTorch Linear default U[-1/sqrt(fan_in), +]."""
    ks = jax.random.split(key, 6)

    def lin(kw, kb, fan_in, fan_out):
        bound = 1.0 / jnp.sqrt(fan_in)
        w = jax.random.uniform(kw, (fan_in, fan_out), jnp.float32, -bound, bound)
        b = jax.random.uniform(kb, (fan_out,), jnp.float32, -bound, bound)
        return w, b

    w1, b1 = lin(ks[0], ks[1], state_size, hidden)
    w2, b2 = lin(ks[2], ks[3], hidden, hidden)
    w3, b3 = lin(ks[4], ks[5], hidden, 1)
    return (w1, b1, w2, b2, w3, b3)


if __name__ == "__main__":
    key = jax.random.PRNGKey(0)
    k_x, k_p = jax.random.split(key)

    batch = 96           # small demo; multi-step grid with block_b=32
    state_size = 8

    x = jax.random.normal(k_x, (batch, state_size), jnp.float32)
    params = init_params(k_p, state_size)
    prepared = prepare_params(params)        # one-time weight prep (hoisted)

    out = value_network_forward(x, prepared, block_b=32)     # grid of 3 tiles
    jax.block_until_ready(out)

    # Pure-JAX f32 reference (bf16 MXU operands => looser tolerance).
    w1, b1, w2, b2, w3, b3 = params
    ref = jnp.maximum(x @ w1 + b1, 0.0)
    ref = jnp.maximum(ref @ w2 + b2, 0.0)
    ref = ref @ w3 + b3

    assert out.shape == (batch, 1)
    assert jnp.allclose(out, ref, atol=5e-2, rtol=5e-2), (
        float(jnp.max(jnp.abs(out - ref))))

    # Ragged-tail path: B not divisible by the tile -> boundary block is
    # masked on store (no padding pass in the wrapper).
    out2 = value_network_forward(x[:70], prepared, block_b=32)
    jax.block_until_ready(out2)
    assert out2.shape == (70, 1)
    assert jnp.allclose(out2, ref[:70], atol=5e-2, rtol=5e-2)

    print("KERNEL_OK")
</pallas_src>

<mosaic_0001>
module attributes {stable_mosaic.version = 11 : i64} {
  func.func @value_net_kernel(%arg0: i32, %arg1: memref<32x8xf32, #tpu.memory_space<vmem>>, %arg2: memref<8x128xbf16, #tpu.memory_space<vmem>>, %arg3: memref<1x128xf32, #tpu.memory_space<vmem>>, %arg4: memref<128x128xbf16, #tpu.memory_space<vmem>>, %arg5: memref<1x128xf32, #tpu.memory_space<vmem>>, %arg6: memref<1x128xf32, #tpu.memory_space<vmem>>, %arg7: memref<1x1xf32, #tpu.memory_space<vmem>>, %arg8: memref<32x1xf32, #tpu.memory_space<vmem>>) attributes {dimension_semantics = [#tpu.dimension_semantics<parallel>], iteration_bounds = array<i64: 3>, scalar_prefetch = 0 : i64, scratch_operands = 0 : i64, tpu.core_type = #tpu.core_type<tc>, window_params = [{transform_indices = @transform_0, window_bounds = array<i64: 32, 8>}, {pipeline_mode = #tpu.pipeline_mode<synchronous>, transform_indices = @transform_1, window_bounds = array<i64: 8, 128>}, {pipeline_mode = #tpu.pipeline_mode<synchronous>, transform_indices = @transform_2, window_bounds = array<i64: 1, 128>}, {pipeline_mode = #tpu.pipeline_mode<synchronous>, transform_indices = @transform_3, window_bounds = array<i64: 128, 128>}, {pipeline_mode = #tpu.pipeline_mode<synchronous>, transform_indices = @transform_4, window_bounds = array<i64: 1, 128>}, {pipeline_mode = #tpu.pipeline_mode<synchronous>, transform_indices = @transform_5, window_bounds = array<i64: 1, 128>}, {pipeline_mode = #tpu.pipeline_mode<synchronous>, transform_indices = @transform_6, window_bounds = array<i64: 1, 1>}, {transform_indices = @transform_7, window_bounds = array<i64: 32, 1>}]} {
    %c0 = arith.constant 0 : index
    %c0_0 = arith.constant 0 : index
    %0 = vector.load %arg1[%c0, %c0_0] : memref<32x8xf32, #tpu.memory_space<vmem>>, vector<32x8xf32>
    %1 = arith.truncf %0 : vector<32x8xf32> to vector<32x8xbf16>
    %c0_1 = arith.constant 0 : index
    %c0_2 = arith.constant 0 : index
    %2 = vector.load %arg2[%c0_1, %c0_2] : memref<8x128xbf16, #tpu.memory_space<vmem>>, vector<8x128xbf16>
    %cst = arith.constant dense<0.000000e+00> : vector<32x128xf32>
    %3 = tpu.matmul %1, %2, %cst {dimension_numbers = #tpu.dot_dimension_numbers<[1], [0], [0], [1], [0, 0, 1, 1], [], []>} : vector<32x8xbf16>, vector<8x128xbf16>, vector<32x128xf32> -> vector<32x128xf32>
    %c0_3 = arith.constant 0 : index
    %c0_4 = arith.constant 0 : index
    %4 = vector.load %arg3[%c0_3, %c0_4] : memref<1x128xf32, #tpu.memory_space<vmem>>, vector<1x128xf32>
    %5 = vector.broadcast %4 : vector<1x128xf32> to vector<32x128xf32>
    %6 = arith.addf %3, %5 : vector<32x128xf32>
    %cst_5 = arith.constant 0.000000e+00 : f32
    %7 = vector.broadcast %cst_5 : f32 to vector<32x128xf32>
    %8 = arith.maximumf %6, %7 : vector<32x128xf32>
    %9 = arith.truncf %8 : vector<32x128xf32> to vector<32x128xbf16>
    %c0_6 = arith.constant 0 : index
    %c0_7 = arith.constant 0 : index
    %10 = vector.load %arg4[%c0_6, %c0_7] : memref<128x128xbf16, #tpu.memory_space<vmem>>, vector<128x128xbf16>
    %cst_8 = arith.constant dense<0.000000e+00> : vector<32x128xf32>
    %11 = tpu.matmul %9, %10, %cst_8 {dimension_numbers = #tpu.dot_dimension_numbers<[1], [0], [0], [1], [0, 0, 1, 1], [], []>} : vector<32x128xbf16>, vector<128x128xbf16>, vector<32x128xf32> -> vector<32x128xf32>
    %c0_9 = arith.constant 0 : index
    %c0_10 = arith.constant 0 : index
    %12 = vector.load %arg5[%c0_9, %c0_10] : memref<1x128xf32, #tpu.memory_space<vmem>>, vector<1x128xf32>
    %13 = vector.broadcast %12 : vector<1x128xf32> to vector<32x128xf32>
    %14 = arith.addf %11, %13 : vector<32x128xf32>
    %cst_11 = arith.constant 0.000000e+00 : f32
    %15 = vector.broadcast %cst_11 : f32 to vector<32x128xf32>
    %16 = arith.maximumf %14, %15 : vector<32x128xf32>
    %c0_12 = arith.constant 0 : index
    %c0_13 = arith.constant 0 : index
    %17 = vector.load %arg6[%c0_12, %c0_13] : memref<1x128xf32, #tpu.memory_space<vmem>>, vector<1x128xf32>
    %18 = vector.broadcast %17 : vector<1x128xf32> to vector<32x128xf32>
    %19 = arith.mulf %16, %18 : vector<32x128xf32>
    %cst_14 = arith.constant dense<0.000000e+00> : vector<32xf32>
    %20 = vector.multi_reduction <add>, %19, %cst_14 [1] : vector<32x128xf32> to vector<32xf32>
    %21 = vector.shape_cast %20 : vector<32xf32> to vector<32x1xf32>
    %c0_15 = arith.constant 0 : index
    %c0_16 = arith.constant 0 : index
    %22 = vector.load %arg7[%c0_15, %c0_16] : memref<1x1xf32, #tpu.memory_space<vmem>>, vector<1x1xf32>
    %23 = vector.broadcast %22 : vector<1x1xf32> to vector<32x1xf32>
    %24 = arith.addf %21, %23 : vector<32x1xf32>
    %c0_17 = arith.constant 0 : index
    %c0_18 = arith.constant 0 : index
    %25 = vector.load %arg8[%c0_17, %c0_18] : memref<32x1xf32, #tpu.memory_space<vmem>>, vector<32x1xf32>
    tpu.vector_store %arg8[%c0_17, %c0_18], %24 {strides = array<i32>} : memref<32x1xf32, #tpu.memory_space<vmem>>, vector<32x1xf32>,
    return
  }
  func.func @transform_0(%arg0: i32) -> (i32, i32) {
    %c0_i32 = arith.constant 0 : i32
    %c0_i32_0 = arith.constant 0 : i32
    return %arg0, %c0_i32 : i32, i32
  }
  func.func @transform_1(%arg0: i32) -> (i32, i32) {
    %c0_i32 = arith.constant 0 : i32
    %c0_i32_0 = arith.constant 0 : i32
    %c0_i32_1 = arith.constant 0 : i32
    return %c0_i32, %c0_i32_0 : i32, i32
  }
  func.func @transform_2(%arg0: i32) -> (i32, i32) {
    %c0_i32 = arith.constant 0 : i32
    %c0_i32_0 = arith.constant 0 : i32
    %c0_i32_1 = arith.constant 0 : i32
    return %c0_i32, %c0_i32_0 : i32, i32
  }
  func.func @transform_3(%arg0: i32) -> (i32, i32) {
    %c0_i32 = arith.constant 0 : i32
    %c0_i32_0 = arith.constant 0 : i32
    %c0_i32_1 = arith.constant 0 : i32
    return %c0_i32, %c0_i32_0 : i32, i32
  }
  func.func @transform_4(%arg0: i32) -> (i32, i32) {
    %c0_i32 = arith.constant 0 : i32
    %c0_i32_0 = arith.constant 0 : i32
    %c0_i32_1 = arith.constant 0 : i32
    return %c0_i32, %c0_i32_0 : i32, i32
  }
  func.func @transform_5(%arg0: i32) -> (i32, i32) {
    %c0_i32 = arith.constant 0 : i32
    %c0_i32_0 = arith.constant 0 : i32
    %c0_i32_1 = arith.constant 0 : i32
    return %c0_i32, %c0_i32_0 : i32, i32
  }
  func.func @transform_6(%arg0: i32) -> (i32, i32) {
    %c0_i32 = arith.constant 0 : i32
    %c0_i32_0 = arith.constant 0 : i32
    %c0_i32_1 = arith.constant 0 : i32
    return %c0_i32, %c0_i32_0 : i32, i32
  }
  func.func @transform_7(%arg0: i32) -> (i32, i32) {
    %c0_i32 = arith.constant 0 : i32
    %c0_i32_0 = arith.constant 0 : i32
    return %arg0, %c0_i32 : i32, i32
  }
}

</mosaic_0001>

<llo_original>
// kernel: tpu_custom_call.1
$region0: #{tpu_custom_call.1}
  #allocation0 [shape = 'u32[]', space=smem, size = 0x4, offset = 0x4, fixed_abs, tag = 'smem constant byte address 0x4 - core index']
  #allocation1 [shape = 'u32[144,128]{1,0:T(1,128)}', space=vmem, size = 0x12000, scoped, tag = 'internal scratch']
  #allocation2 [shape = 'f32[1,1]{1,0:T(1,128)S(1)}', space=vmem, size = 0x200, scoped, tag = 'scoped memory for tpu_custom_call.1']
  %s0 = inlined_call_operand.vmem [shape: f32[96,8], index: 0, kind: input, shape index: {}]
  %s1 = inlined_call_operand.vmem [shape: bf16[8,128], index: 1, kind: input, shape index: {}]
  %s2 = inlined_call_operand.vmem [shape: f32[1,128], index: 2, kind: input, shape index: {}]
  %s3 = inlined_call_operand.vmem [shape: bf16[128,128], index: 3, kind: input, shape index: {}]
  %s4 = inlined_call_operand.vmem [shape: f32[1,128], index: 4, kind: input, shape index: {}]
  %s5 = inlined_call_operand.vmem [shape: f32[1,128], index: 5, kind: input, shape index: {}]
  %s6 = inlined_call_operand.<no memory space> [shape: f32[1,1], index: 6, kind: input, shape index: {}]
  %s7 = inlined_call_operand.vmem [shape: f32[96,1], index: 7, kind: output, shape index: {}]
  %s8 = sld [smem:[#allocation0]]
  $region61: #{tpu_custom_call.1} parent=0
    _
  %s10 = ssub.s32 1, %s8
  %s11 = scalar_select 0, %s10, %s8
  %v12 = vstv %s6
  %13 = vst [vmem:[#allocation2] sm:$0x1] %v12
  loop: start=0, step=1, limit=5
  $region2: #{tpu_custom_call.1} parent=0 // loop_pre_header
    _
  $region3: #{tpu_custom_call.1} parent=0 // loop_header
    %s15 = sphi 0, %s19
    %p16 = scmp.ge.s32.totalorder %s15, 5
    %s25 = sphi 0, %s27
    %s28 = sphi 0, %s25
    %s29 = sphi 0, %s28
    %s45 = sphi 0, %s29
    %s49 = sphi 0, %s49
    %s51 = sphi 0, %s49
    %s52 = sphi 0, %s51
    %s66 = sphi 0, %s52
    %s70 = sphi 0, %s70
    %s72 = sphi 0, %s70
    %s73 = sphi 0, %s72
    %s87 = sphi 0, %s73
    %s91 = sphi 0, %s91
    %s93 = sphi 0, %s91
    %s94 = sphi 0, %s93
    %s108 = sphi 0, %s94
    %s112 = sphi 0, %s112
    %s114 = sphi 0, %s112
    %s115 = sphi 0, %s114
    %s129 = sphi 0, %s115
    %s133 = sphi 0, %s133
    %s135 = sphi 0, %s133
    %s136 = sphi 0, %s135
    %s150 = sphi 0, %s136
    %s154 = sphi 0, %s154
    %s156 = sphi 0, %s154
    %s157 = sphi 0, %s156
    %s171 = sphi 0, %s157
    %s177 = sphi 0, %s179
    %s180 = sphi 0, %s177
    %s181 = sphi 0, %s180
    %s197 = sphi 0, %s181
  $region4: #{tpu_custom_call.1} parent=0 // loop_header_branch
    %18 = sbr.rel (%p16) target = $region8
  $region5: #{tpu_custom_call.1} parent=0 // loop_body
    %s20 = ssub.s32 %s15, 1
    %s21 = ssub.s32 %s15, 2
    %s22 = sadd.s32 %s15, 1
    %s23 = ssub.s32 %s15, %s22
    %p24 = scmp.eq.s32.totalorder %s23, 0
    %s26 = sadd.s32 %s25, 1
    %s27 = scalar_select %p24, %s25, %s26
    %p30 = pneg %p24
    %p31 = scmp.eq.s32.totalorder %s15, 2
    %p32 = por %p30, %p31
    %p33 = scmp.ne.s32.totalorder %s25, %s28
    %p34 = scmp.eq.s32.totalorder %s15, 0
    %p35 = por %p33, %p34
    %p36 = scmp.ne.s32.totalorder %s25, %s28
    %p37 = scmp.eq.s32.totalorder %s20, 2
    %p38 = por %p36, %p37
    %p39 = scmp.ne.s32.totalorder %s28, %s29
    %p40 = scmp.eq.s32.totalorder %s20, 0
    %p41 = por %p39, %p40
    %p42 = scmp.ne.s32.totalorder %s28, %s29
    %p43 = scmp.eq.s32.totalorder %s21, 2
    %p44 = por %p42, %p43
    %p46 = scmp.ne.s32.totalorder %s29, %s45
    %p47 = scmp.eq.s32.totalorder %s21, 0
    %p48 = por %p46, %p47
    %s50 = sadd.s32 %s49, 1
    %p53 = scmp.eq.s32.totalorder %s15, 2
    %p54 = scmp.ne.s32.totalorder %s49, %s51
    %p55 = scmp.eq.s32.totalorder %s15, 0
    %p56 = por %p54, %p55
    %p57 = scmp.ne.s32.totalorder %s49, %s51
    %p58 = scmp.eq.s32.totalorder %s20, 2
    %p59 = por %p57, %p58
    %p60 = scmp.ne.s32.totalorder %s51, %s52
    %p61 = scmp.eq.s32.totalorder %s20, 0
    %p62 = por %p60, %p61
    %p63 = scmp.ne.s32.totalorder %s51, %s52
    %p64 = scmp.eq.s32.totalorder %s21, 2
    %p65 = por %p63, %p64
    %p67 = scmp.ne.s32.totalorder %s52, %s66
    %p68 = scmp.eq.s32.totalorder %s21, 0
    %p69 = por %p67, %p68
    %s71 = sadd.s32 %s70, 1
    %p74 = scmp.eq.s32.totalorder %s15, 2
    %p75 = scmp.ne.s32.totalorder %s70, %s72
    %p76 = scmp.eq.s32.totalorder %s15, 0
    %p77 = por %p75, %p76
    %p78 = scmp.ne.s32.totalorder %s70, %s72
    %p79 = scmp.eq.s32.totalorder %s20, 2
    %p80 = por %p78, %p79
    %p81 = scmp.ne.s32.totalorder %s72, %s73
    %p82 = scmp.eq.s32.totalorder %s20, 0
    %p83 = por %p81, %p82
    %p84 = scmp.ne.s32.totalorder %s72, %s73
    %p85 = scmp.eq.s32.totalorder %s21, 2
    %p86 = por %p84, %p85
    %p88 = scmp.ne.s32.totalorder %s73, %s87
    %p89 = scmp.eq.s32.totalorder %s21, 0
    %p90 = por %p88, %p89
    %s92 = sadd.s32 %s91, 1
    %p95 = scmp.eq.s32.totalorder %s15, 2
    %p96 = scmp.ne.s32.totalorder %s91, %s93
    %p97 = scmp.eq.s32.totalorder %s15, 0
    %p98 = por %p96, %p97
    %p99 = scmp.ne.s32.totalorder %s91, %s93
    %p100 = scmp.eq.s32.totalorder %s20, 2
    %p101 = por %p99, %p100
    %p102 = scmp.ne.s32.totalorder %s93, %s94
    %p103 = scmp.eq.s32.totalorder %s20, 0
    %p104 = por %p102, %p103
    %p105 = scmp.ne.s32.totalorder %s93, %s94
    %p106 = scmp.eq.s32.totalorder %s21, 2
    %p107 = por %p105, %p106
    %p109 = scmp.ne.s32.totalorder %s94, %s108
    %p110 = scmp.eq.s32.totalorder %s21, 0
    %p111 = por %p109, %p110
    %s113 = sadd.s32 %s112, 1
    %p116 = scmp.eq.s32.totalorder %s15, 2
    %p117 = scmp.ne.s32.totalorder %s112, %s114
    %p118 = scmp.eq.s32.totalorder %s15, 0
    %p119 = por %p117, %p118
    %p120 = scmp.ne.s32.totalorder %s112, %s114
    %p121 = scmp.eq.s32.totalorder %s20, 2
    %p122 = por %p120, %p121
    %p123 = scmp.ne.s32.totalorder %s114, %s115
    %p124 = scmp.eq.s32.totalorder %s20, 0
    %p125 = por %p123, %p124
    %p126 = scmp.ne.s32.totalorder %s114, %s115
    %p127 = scmp.eq.s32.totalorder %s21, 2
    %p128 = por %p126, %p127
    %p130 = scmp.ne.s32.totalorder %s115, %s129
    %p131 = scmp.eq.s32.totalorder %s21, 0
    %p132 = por %p130, %p131
    %s134 = sadd.s32 %s133, 1
    %p137 = scmp.eq.s32.totalorder %s15, 2
    %p138 = scmp.ne.s32.totalorder %s133, %s135
    %p139 = scmp.eq.s32.totalorder %s15, 0
    %p140 = por %p138, %p139
    %p141 = scmp.ne.s32.totalorder %s133, %s135
    %p142 = scmp.eq.s32.totalorder %s20, 2
    %p143 = por %p141, %p142
    %p144 = scmp.ne.s32.totalorder %s135, %s136
    %p145 = scmp.eq.s32.totalorder %s20, 0
    %p146 = por %p144, %p145
    %p147 = scmp.ne.s32.totalorder %s135, %s136
    %p148 = scmp.eq.s32.totalorder %s21, 2
    %p149 = por %p147, %p148
    %p151 = scmp.ne.s32.totalorder %s136, %s150
    %p152 = scmp.eq.s32.totalorder %s21, 0
    %p153 = por %p151, %p152
    %s155 = sadd.s32 %s154, 1
    %p158 = scmp.eq.s32.totalorder %s15, 2
    %p159 = scmp.ne.s32.totalorder %s154, %s156
    %p160 = scmp.eq.s32.totalorder %s15, 0
    %p161 = por %p159, %p160
    %p162 = scmp.ne.s32.totalorder %s154, %s156
    %p163 = scmp.eq.s32.totalorder %s20, 2
    %p164 = por %p162, %p163
    %p165 = scmp.ne.s32.totalorder %s156, %s157
    %p166 = scmp.eq.s32.totalorder %s20, 0
    %p167 = por %p165, %p166
    %p168 = scmp.ne.s32.totalorder %s156, %s157
    %p169 = scmp.eq.s32.totalorder %s21, 2
    %p170 = por %p168, %p169
    %p172 = scmp.ne.s32.totalorder %s157, %s171
    %p173 = scmp.eq.s32.totalorder %s21, 0
    %p174 = por %p172, %p173
    %s175 = ssub.s32 %s15, %s22
    %p176 = scmp.eq.s32.totalorder %s175, 0
    %s178 = sadd.s32 %s177, 1
    %s179 = scalar_select %p176, %s177, %s178
    %p182 = pneg %p176
    %p183 = scmp.eq.s32.totalorder %s15, 2
    %p184 = por %p182, %p183
    %p185 = scmp.ne.s32.totalorder %s177, %s180
    %p186 = scmp.eq.s32.totalorder %s15, 0
    %p187 = por %p185, %p186
    %p188 = scmp.ne.s32.totalorder %s177, %s180
    %p189 = scmp.eq.s32.totalorder %s20, 2
    %p190 = por %p188, %p189
    %p191 = scmp.ne.s32.totalorder %s180, %s181
    %p192 = scmp.eq.s32.totalorder %s20, 0
    %p193 = por %p191, %p192
    %p194 = scmp.ne.s32.totalorder %s180, %s181
    %p195 = scmp.eq.s32.totalorder %s21, 2
    %p196 = por %p194, %p195
    %p198 = scmp.ne.s32.totalorder %s181, %s197
    %p199 = scmp.eq.s32.totalorder %s21, 0
    %p200 = por %p198, %p199
    %p201 = scmp.le.s32.totalorder 1, %s15
    %p202 = scmp.lt.s32.totalorder %s15, 4
    %p203 = pnand %p201, %p202
    %p204 = pneg %p203
    // Predicated region
    $region9: #{tpu_custom_call.1} parent=5 // pred_check
      _
    $region10: #{tpu_custom_call.1} parent=5 // pred_check_branch
      %206 = sbr.rel (%p203) target = $region12
    $region11: #{tpu_custom_call.1} parent=5 // pred_region
      %s207 = ssub.s32 %s15, 1
      // Predicated region
      $region13: #{tpu_custom_call.1} parent=11 // pred_check
        %p208 = pneg %p62
      $region14: #{tpu_custom_call.1} parent=11 // pred_check_branch
        %210 = sbr.rel (%p208) target = $region16
      $region15: #{tpu_custom_call.1} parent=11 // pred_region
        _
      $region16: #{tpu_custom_call.1} parent=11 // pred_fallthru
        _
      // Predicated region
      $region17: #{tpu_custom_call.1} parent=11 // pred_check
        %p211 = pneg %p83
      $region18: #{tpu_custom_call.1} parent=11 // pred_check_branch
        %213 = sbr.rel (%p211) target = $region20
      $region19: #{tpu_custom_call.1} parent=11 // pred_region
        _
      $region20: #{tpu_custom_call.1} parent=11 // pred_fallthru
        _
      // Predicated region
      $region21: #{tpu_custom_call.1} parent=11 // pred_check
        %p214 = pneg %p104
      $region22: #{tpu_custom_call.1} parent=11 // pred_check_branch
        %216 = sbr.rel (%p214) target = $region24
      $region23: #{tpu_custom_call.1} parent=11 // pred_region
        _
      $region24: #{tpu_custom_call.1} parent=11 // pred_fallthru
        _
      // Predicated region
      $region25: #{tpu_custom_call.1} parent=11 // pred_check
        %p217 = pneg %p125
      $region26: #{tpu_custom_call.1} parent=11 // pred_check_branch
        %219 = sbr.rel (%p217) target = $region28
      $region27: #{tpu_custom_call.1} parent=11 // pred_region
        _
      $region28: #{tpu_custom_call.1} parent=11 // pred_fallthru
        _
      // Predicated region
      $region29: #{tpu_custom_call.1} parent=11 // pred_check
        %p220 = pneg %p146
      $region30: #{tpu_custom_call.1} parent=11 // pred_check_branch
        %222 = sbr.rel (%p220) target = $region32
      $region31: #{tpu_custom_call.1} parent=11 // pred_region
        _
      $region32: #{tpu_custom_call.1} parent=11 // pred_fallthru
        _
      // Predicated region
      $region33: #{tpu_custom_call.1} parent=11 // pred_check
        %p223 = pneg %p167
      $region34: #{tpu_custom_call.1} parent=11 // pred_check_branch
        %225 = sbr.rel (%p223) target = $region36
      $region35: #{tpu_custom_call.1} parent=11 // pred_region
        _
      $region36: #{tpu_custom_call.1} parent=11 // pred_fallthru
        _
    $region12: #{tpu_custom_call.1} parent=5 // pred_fallthru
      _
    %p226 = scmp.lt.s32.totalorder %s15, 3
    // Predicated region
    $region37: #{tpu_custom_call.1} parent=5 // pred_check
      %p227 = pneg %p226
    $region38: #{tpu_custom_call.1} parent=5 // pred_check_branch
      %229 = sbr.rel (%p227) target = $region40
    $region39: #{tpu_custom_call.1} parent=5 // pred_region
      // Predicated region
      $region41: #{tpu_custom_call.1} parent=39 // pred_check
        %p230 = pneg %p35
      $region42: #{tpu_custom_call.1} parent=39 // pred_check_branch
        %232 = sbr.rel (%p230) target = $region44
      $region43: #{tpu_custom_call.1} parent=39 // pred_region
        %s233 = smul.u32 4, %s15
        %p234 = scmp.lt.s32.totalorder %s233, 11
        %s235 = scalar_select %p234, %s233, 11
        %s236 = smul.addr %s235, 8
        %s237 = scalar_lea.vmem %s0, %s236
        %s238 = smul.u32 4, %s15
      $region44: #{tpu_custom_call.1} parent=39 // pred_fallthru
        _
    $region40: #{tpu_custom_call.1} parent=5 // pred_fallthru
      _
    %p239 = scmp.le.s32.totalorder 1, %s15
    %p240 = scmp.lt.s32.totalorder %s15, 4
    %p241 = pnand %p239, %p240
    %p242 = pneg %p241
    // Predicated region
    $region45: #{tpu_custom_call.1} parent=5 // pred_check
      _
    $region46: #{tpu_custom_call.1} parent=5 // pred_check_branch
      %244 = sbr.rel (%p241) target = $region48
    $region47: #{tpu_custom_call.1} parent=5 // pred_region
      %s245 = ssub.s32 %s15, 1
      %s246 = smul.u32 4, %s20
      %p247 = scmp.lt.s32.totalorder %s246, 11
      %s248 = scalar_select %p247, %s246, 11
      %s249 = smul.addr %s248, 8
      %s250 = scalar_lea.vmem %s0, %s249
      %p251 = pneg %p41
      %p252 = pneg %p38
      %p253 = pneg %p62
      %p254 = pneg %p59
      %p255 = pneg %p83
      %p256 = pneg %p80
      %p257 = pneg %p104
      %p258 = pneg %p101
      %p259 = pneg %p125
      %p260 = pneg %p122
      %p261 = pneg %p146
      %p262 = pneg %p143
      %p263 = pneg %p167
      %p264 = pneg %p164
      %p265 = pneg %p193
      %p266 = pneg %p190
      %s267 = smul.u32 4, %s20
      %p268 = scmp.lt.s32.totalorder %s267, 11
      %s269 = scalar_select %p268, %s267, 11
      %s270 = smul.addr %s269, 8
      %s271 = scalar_lea.vmem %s7, %s270
      %s272 = smul.u32 4, %s20
      %p273 = scmp.lt.s32.totalorder %s272, 11
      %s274 = scalar_select %p273, %s272, 11
      %s275 = smul.addr %s274, 8
      %s276 = scalar_lea.vmem %s0, %s275
      %s277 = smul.u32 4, %s20
      %s278 = smul.u32 4, %s20
      %p279 = scmp.lt.s32.totalorder %s278, 11
      %s280 = scalar_select %p279, %s278, 11
      %s281 = smul.addr %s280, 8
      %s282 = scalar_lea.vmem %s7, %s281
      %s283 = smul.u32 4, %s20
      %v285 = vld [vmem:[%s276] sm:$0xff]
      %v286 = vld [vmem:[%s276 + $0x8] sm:$0xff]
      %v287 = vld [vmem:[%s276 + $0x10] sm:$0xff]
      %v288 = vld [vmem:[%s276 + $0x18] sm:$0xff]
      %v289 = vpack.c.bf16 %v286, %v285
      %v290 = vpack.c.bf16 %v288, %v287
      %v291 = vld [vmem:[%s1] sm:$0xf]
      %v292 = vld [vmem:[%s2] sm:$0x1]
      %v294 = vlaneseq
      %v295 = vshrl.u32 %v294, 7
      %v296 = vsub.s32 0, %v295
      %v297 = vrot.slane %v292, %v296
      %vm299 = vcmask 64512
      %v301 = vsel %vm299, %v289, 0
      %v304 = vsel %vm299, %v290, 0
      %vm306 = vcmask 1043456
      %v308 = vsel %vm306, %v291, 0
      %310 = vmatprep.subr.bf16.mxu0 0
      %311 = vmatpush1.bf16.msra.mxu0 %v308
      %312 = vmatprep.subr.bf16.mxu0 0
      %313 = vmatpush1.bf16.msra.mxu0 0
      %314 = vmatprep.subr.bf16.mxu0 0
      %315 = vmatpush1.bf16.msra.mxu0 0
      %316 = vmatprep.subr.bf16.mxu0 0
      %317 = vmatpush1.bf16.msra.mxu0 0
      %318 = vmatprep.subr.bf16.mxu0 0
      %319 = vmatpush1.bf16.msra.mxu0 0
      %320 = vmatprep.subr.bf16.mxu0 0
      %321 = vmatpush1.bf16.msra.mxu0 0
      %322 = vmatprep.subr.bf16.mxu0 0
      %323 = vmatpush1.bf16.msra.mxu0 0
      %324 = vmatprep.subr.bf16.mxu0 0
      %325 = vmatpush1.bf16.msra.mxu0 0
      %326 = vmatprep.subr.bf16.mxu0 0
      %327 = vmatpush1.bf16.msra.mxu0 0
      %328 = vmatprep.subr.bf16.mxu0 0
      %329 = vmatpush1.bf16.msra.mxu0 0
      %330 = vmatprep.subr.bf16.mxu0 0
      %331 = vmatpush1.bf16.msra.mxu0 0
      %332 = vmatprep.subr.bf16.mxu0 0
      %333 = vmatpush1.bf16.msra.mxu0 0
      %334 = vmatprep.subr.bf16.mxu0 0
      %335 = vmatpush1.bf16.msra.mxu0 0
      %336 = vmatprep.subr.bf16.mxu0 0
      %337 = vmatpush1.bf16.msra.mxu0 0
      %338 = vmatprep.subr.bf16.mxu0 0
      %339 = vmatpush1.bf16.msra.mxu0 0
      %340 = vmatprep.subr.bf16.mxu0 0
      %341 = vmatpush1.bf16.msra.mxu0 0
      %342 = vmatprep.mubr.bf16.mxu0 0
      %343 = vmatmul.mubr.bf16.gmra.mrb[0].mxu0 %v301
      %v344 = vpop.f32.mrb[0].mxu0
      %v345 = vadd.f32 %v297, %v344
      %v346 = vpop.f32.mrb[0].mxu0
      %v347 = vpop.f32.mrb[0].mxu0
      %v348 = vadd.f32 %v297, %v347
      %v349 = vpop.f32.mrb[0].mxu0
      %350 = vmatprep.mubr.bf16.mxu0 0
      %351 = vmatmul.mubr.bf16.gmra.mrb[0].mxu0 %v304
      %v352 = vpop.f32.mrb[0].mxu0
      %v353 = vadd.f32 %v297, %v352
      %v354 = vpop.f32.mrb[0].mxu0
      %v355 = vpop.f32.mrb[0].mxu0
      %v356 = vadd.f32 %v297, %v355
      %v357 = vpop.f32.mrb[0].mxu0
      %358 = vdwg.mxu0
      %v359 = vmax.f32 %v345, 0.0
      %v360 = vmax.f32 %v348, 0.0
      %v361 = vmax.f32 %v353, 0.0
      %v362 = vmax.f32 %v356, 0.0
      %v363 = vpack.c.bf16 %v360, %v359
      %v364 = vpack.c.bf16 %v362, %v361
      %v365 = vld [vmem:[%s3] sm:$0xf]
      %v366 = vld [vmem:[%s3 + $0x4] sm:$0xf]
      %v367 = vld [vmem:[%s3 + $0x8] sm:$0xf]
      %v368 = vld [vmem:[%s3 + $0xc] sm:$0xf]
      %v369 = vld [vmem:[%s3 + $0x10] sm:$0xf]
      %v370 = vld [vmem:[%s3 + $0x14] sm:$0xf]
      %v371 = vld [vmem:[%s3 + $0x18] sm:$0xf]
      %v372 = vld [vmem:[%s3 + $0x1c] sm:$0xf]
      %v373 = vld [vmem:[%s3 + $0x20] sm:$0xf]
      %v374 = vld [vmem:[%s3 + $0x24] sm:$0xf]
      %v375 = vld [vmem:[%s3 + $0x28] sm:$0xf]
      %v376 = vld [vmem:[%s3 + $0x2c] sm:$0xf]
      %v377 = vld [vmem:[%s3 + $0x30] sm:$0xf]
      %v378 = vld [vmem:[%s3 + $0x34] sm:$0xf]
      %v379 = vld [vmem:[%s3 + $0x38] sm:$0xf]
      %v380 = vld [vmem:[%s3 + $0x3c] sm:$0xf]
      %v381 = vld [vmem:[%s4] sm:$0x1]
      %v383 = vlaneseq
      %v384 = vshrl.u32 %v383, 7
      %v385 = vsub.s32 0, %v384
      %v386 = vrot.slane %v381, %v385
      %v404 = vunpack.c.l.b16 %v365
      %v405 = vunpack.c.l.b16 %v366
      %v406 = vunpack.c.l.b16 %v367
      %v407 = vunpack.c.l.b16 %v368
      %v408 = vunpack.c.l.b16 %v369
      %v409 = vunpack.c.l.b16 %v370
      %v410 = vunpack.c.l.b16 %v371
      %v411 = vunpack.c.l.b16 %v372
      %v412 = vunpack.c.l.b16 %v373
      %v413 = vunpack.c.l.b16 %v374
      %v414 = vunpack.c.l.b16 %v375
      %v415 = vunpack.c.l.b16 %v376
      %v416 = vunpack.c.l.b16 %v377
      %v417 = vunpack.c.l.b16 %v378
      %v418 = vunpack.c.l.b16 %v379
      %v419 = vunpack.c.l.b16 %v380
      %v420 = vpack.c.b16 %v405, %v404
      %v421 = vpack.c.b16 %v407, %v406
      %v422 = vpack.c.b16 %v409, %v408
      %v423 = vpack.c.b16 %v411, %v410
      %v424 = vpack.c.b16 %v413, %v412
      %v425 = vpack.c.b16 %v415, %v414
      %v426 = vpack.c.b16 %v417, %v416
      %v427 = vpack.c.b16 %v419, %v418
      %436 = vmatprep.subr.bf16.mxu0 0
      %437 = vmatpush1.bf16.msra.mxu0 %v420
      %438 = vmatprep.subr.bf16.mxu0 0
      %439 = vmatpush1.bf16.msra.mxu0 %v421
      %440 = vmatprep.subr.bf16.mxu0 0
      %441 = vmatpush1.bf16.msra.mxu0 %v422
      %442 = vmatprep.subr.bf16.mxu0 0
      %443 = vmatpush1.bf16.msra.mxu0 %v423
      %444 = vmatprep.subr.bf16.mxu0 0
      %445 = vmatpush1.bf16.msra.mxu0 %v424
      %446 = vmatprep.subr.bf16.mxu0 0
      %447 = vmatpush1.bf16.msra.mxu0 %v425
      %448 = vmatprep.subr.bf16.mxu0 0
      %449 = vmatpush1.bf16.msra.mxu0 %v426
      %450 = vmatprep.subr.bf16.mxu0 0
      %451 = vmatpush1.bf16.msra.mxu0 %v427
      %452 = vmatprep.subr.bf16.mxu0 0
      %453 = vmatpush1.bf16.msra.mxu0 0
      %454 = vmatprep.subr.bf16.mxu0 0
      %455 = vmatpush1.bf16.msra.mxu0 0
      %456 = vmatprep.subr.bf16.mxu0 0
      %457 = vmatpush1.bf16.msra.mxu0 0
      %458 = vmatprep.subr.bf16.mxu0 0
      %459 = vmatpush1.bf16.msra.mxu0 0
      %460 = vmatprep.subr.bf16.mxu0 0
      %461 = vmatpush1.bf16.msra.mxu0 0
      %462 = vmatprep.subr.bf16.mxu0 0
      %463 = vmatpush1.bf16.msra.mxu0 0
      %464 = vmatprep.subr.bf16.mxu0 0
      %465 = vmatpush1.bf16.msra.mxu0 0
      %466 = vmatprep.subr.bf16.mxu0 0
      %467 = vmatpush1.bf16.msra.mxu0 0
      %468 = vmatprep.mubr.bf16.mxu0 0
      %469 = vmatmul.mubr.bf16.gmra.mrb[0].mxu0 %v363
      %v470 = vpop.f32.mrb[0].mxu0
      %v471 = vadd.f32 %v386, %v470
      %v472 = vpop.f32.mrb[0].mxu0
      %v473 = vpop.f32.mrb[0].mxu0
      %v474 = vadd.f32 %v386, %v473
      %v475 = vpop.f32.mrb[0].mxu0
      %476 = vmatprep.mubr.bf16.mxu0 0
      %477 = vmatmul.mubr.bf16.gmra.mrb[0].mxu0 %v364
      %v478 = vpop.f32.mrb[0].mxu0
      %v479 = vadd.f32 %v386, %v478
      %v480 = vpop.f32.mrb[0].mxu0
      %v481 = vpop.f32.mrb[0].mxu0
      %v482 = vadd.f32 %v386, %v481
      %v483 = vpop.f32.mrb[0].mxu0
      %484 = vdwg.mxu0
      %v485 = vmax.f32 %v471, 0.0
      %v486 = vmax.f32 %v474, 0.0
      %v487 = vmax.f32 %v479, 0.0
      %v488 = vmax.f32 %v482, 0.0
      %v489 = vld [vmem:[%s5] sm:$0x1]
      %v491 = vlaneseq
      %v492 = vshrl.u32 %v491, 7
      %v493 = vsub.s32 0, %v492
      %v494 = vrot.slane %v489, %v493
      %v496 = vmul.f32 %v485, %v494
      %v497 = vmul.f32 %v486, %v494
      %v498 = vmul.f32 %v487, %v494
      %v499 = vmul.f32 %v488, %v494
      %500 = vadd.xlane.f32.xlu0 %v496
      %v501 = vpop.xlane.xlu0 %500
      %502 = vadd.xlane.f32.xlu0 %v497
      %v503 = vpop.xlane.xlu0 %502
      %504 = vadd.xlane.f32.xlu0 %v498
      %v505 = vpop.xlane.xlu0 %504
      %506 = vadd.xlane.f32.xlu0 %v499
      %v507 = vpop.xlane.xlu0 %506
      %v508 = vld [vmem:[#allocation2] sm:$0x1]
      %v510 = vlaneseq
      %v511 = vshrl.u32 %v510, 7
      %v512 = vsub.s32 0, %v511
      %v513 = vrot.slane %v508, %v512
      %v515 = vadd.f32 %v501, %v513
      %v516 = vadd.f32 %v503, %v513
      %v517 = vadd.f32 %v505, %v513
      %v518 = vadd.f32 %v507, %v513
      %vm519 = vcmask 7168
      %520 = vst.msk [vmem:[%s282] sm:$0xff] %vm519, %v515
      %521 = vst.msk [vmem:[%s282 + $0x8] sm:$0xff] %vm519, %v516
      %522 = vst.msk [vmem:[%s282 + $0x10] sm:$0xff] %vm519, %v517
      %523 = vst.msk [vmem:[%s282 + $0x18] sm:$0xff] %vm519, %v518
      %s524 = smul.u32 4, %s20
      %p525 = scmp.lt.s32.totalorder %s524, 11
      %s526 = scalar_select %p525, %s524, 11
      %s527 = smul.addr %s526, 8
      %s528 = scalar_lea.vmem %s7, %s527
      // Predicated region
      $region49: #{tpu_custom_call.1} parent=47 // pred_check
        %p529 = pneg %p190
      $region50: #{tpu_custom_call.1} parent=47 // pred_check_branch
        %531 = sbr.rel (%p529) target = $region52
      $region51: #{tpu_custom_call.1} parent=47 // pred_region
        %s532 = smul.u32 4, %s20
      $region52: #{tpu_custom_call.1} parent=47 // pred_fallthru
        _
    $region48: #{tpu_custom_call.1} parent=5 // pred_fallthru
      _
    %p533 = scmp.le.s32.totalorder 2, %s15
    // Predicated region
    $region53: #{tpu_custom_call.1} parent=5 // pred_check
      %p534 = pneg %p533
    $region54: #{tpu_custom_call.1} parent=5 // pred_check_branch
      %536 = sbr.rel (%p534) target = $region56
    $region55: #{tpu_custom_call.1} parent=5 // pred_region
      %s537 = ssub.s32 %s15, 2
      // Predicated region
      $region57: #{tpu_custom_call.1} parent=55 // pred_check
        %p538 = pneg %p196
      $region58: #{tpu_custom_call.1} parent=55 // pred_check_branch
        %540 = sbr.rel (%p538) target = $region60
      $region59: #{tpu_custom_call.1} parent=55 // pred_region
        %s541 = smul.u32 4, %s21
        %p542 = scmp.lt.s32.totalorder %s541, 11
        %s543 = scalar_select %p542, %s541, 11
        %s544 = smul.addr %s543, 8
        %s545 = scalar_lea.vmem %s7, %s544
      $region60: #{tpu_custom_call.1} parent=55 // pred_fallthru
        _
    $region56: #{tpu_custom_call.1} parent=5 // pred_fallthru
      _
  $region6: #{tpu_custom_call.1} parent=0 // loop_footer
    %s19 = sadd.s32 1, %s15
  $region7: #{tpu_custom_call.1} parent=0 // loop_footer_branch
    %14 = sbr.rel target = $region3
  $region8: #{tpu_custom_call.1} parent=0 // loop_exit
    _

</llo_original>
